<compile_context>
chip_gen: v5e
topology: v5e:2x2
jax: 0.10.0
libtpu: 0.0.40
codegen_flags: <defaults>
</compile_context>

<pallas_src>
import numpy as np
import jax
import jax.numpy as jnp
from jax.experimental import pallas as pl
from jax.experimental.pallas import tpu as pltpu

H = W = 4              # block_size implied by Linear(16, out_dim)
C1, C2 = 8, 16         # conv channel counts
NPOS1 = H * W          # 16 conv1 output positions
NPOS2 = 4              # 2x2 conv2 output positions
S1 = NPOS1 * C1        # 128 : stage-1 slab width  (pos*8 + ch)
S2 = 128               # stage-2 slab width (4*16 = 64 real columns, padded to 128)
S2_REAL = NPOS2 * C2   # 64
EPS = 1e-5             # PyTorch BatchNorm2d default eps


def _round_up(n, m):
    return ((n + m - 1) // m) * m


def _build_im2col_maps():
    """Parameter-independent gather indices / masks for the im2col weights."""
    # conv1: 16 input pixels -> 16 output positions x 8 channels (taps outside
    # the zero-padded 4x4 grid are masked to 0).
    idx1 = np.zeros((H * W, S1), np.int32)
    msk1 = np.zeros((H * W, S1), np.float32)
    for oh in range(H):
        for ow in range(W):
            for co in range(C1):
                col = (oh * W + ow) * C1 + co
                for ky in range(3):
                    for kx in range(3):
                        hi, wi = oh + ky - 1, ow + kx - 1
                        if 0 <= hi < H and 0 <= wi < W:
                            idx1[hi * W + wi, col] = co * 9 + ky * 3 + kx
                            msk1[hi * W + wi, col] = 1.0
    # conv2: the pooled value for pooled-position (ph,pw), channel ci lives at
    # stage-1 lane 64*ph + 16*pw + ci after the roll-based max-pool.  Output
    # column = (oh*2+ow)*16 + co (< 64); columns 64..127 stay zero.
    idx2 = np.zeros((S1, S2), np.int32)
    msk2 = np.zeros((S1, S2), np.float32)
    for oh in range(2):
        for ow in range(2):
            for co in range(C2):
                col = (oh * 2 + ow) * C2 + co
                for ky in range(3):
                    for kx in range(3):
                        ph, pw = oh + ky - 1, ow + kx - 1
                        if 0 <= ph < 2 and 0 <= pw < 2:
                            for ci in range(C1):
                                row = 64 * ph + 16 * pw + ci
                                idx2[row, col] = (co * C1 + ci) * 9 + ky * 3 + kx
                                msk2[row, col] = 1.0
    return idx1, msk1, idx2, msk2


_IDX1, _MSK1, _IDX2, _MSK2 = _build_im2col_maps()

# Per-channel averaging matrices: rowvec @ A gives, at every column, the total
# over all columns of the same channel (0 at the padded stage-2 columns).
_A1 = np.equal.outer(np.arange(S1) % C1, np.arange(S1) % C1).astype(np.float32)
_lanes2 = np.arange(S2)
_valid2 = _lanes2 < S2_REAL
_A2 = (np.equal.outer(_lanes2 % C2, _lanes2 % C2)
       & np.outer(_valid2, _valid2)).astype(np.float32)


def _prepare_params(params, out_dim, out_pad):
    """Torch-layout parameters -> kernel-layout im2col weights (pure glue).

    Conv biases b1/b2 are intentionally dropped: with training-mode BN the
    constant per-channel shift cancels in (x - mean(x)).
    """
    f32 = jnp.float32
    w1f = params["w1"].astype(f32).reshape(-1)            # co*9 + ky*3 + kx
    w2f = params["w2"].astype(f32).reshape(-1)            # (co*8+ci)*9 + ky*3 + kx
    W1 = w1f[_IDX1] * jnp.asarray(_MSK1)                  # (16, 128)
    W2 = w2f[_IDX2] * jnp.asarray(_MSK2)                  # (128, 128)
    W3 = (jnp.zeros((S2, out_pad), f32)
          .at[:C2, :out_dim].set(params["w3"].astype(f32).T))      # lane-dense out
    zpad = jnp.zeros((S2 - S2_REAL,), f32)
    gb = jnp.stack([                                                # (4, 128)
        jnp.tile(params["g1"].astype(f32), NPOS1),
        jnp.tile(params["be1"].astype(f32), NPOS1),
        jnp.concatenate([jnp.tile(params["g2"].astype(f32), NPOS2), zpad]),
        jnp.concatenate([jnp.tile(params["be2"].astype(f32), NPOS2), zpad]),
    ])
    b3 = jnp.zeros((1, out_pad), f32).at[0, :out_dim].set(params["b3"].astype(f32))
    return W1, W2, W3, gb, b3


def block_encoder_forward(block_nchw, params, *, tile_n=None):
    """block_nchw: (N, 1, 4, 4) float32 (PyTorch NCHW).  Returns (N, out_dim)."""
    N = block_nchw.shape[0]
    out_dim = params["w3"].shape[0]
    out_pad = _round_up(out_dim, 128)          # lane-dense, unmasked stores
    x2d = block_nchw.reshape(N, H * W).astype(jnp.float32)

    if tile_n is None:
        # Aim for ~4 grid steps (>=2 tiles keeps both v7x TCs busy in the apply
        # pass), capped at 1024 rows/step to amortize per-step overhead.
        tile_n = min(1024, max(8, _round_up(pl.cdiv(N, 4), 8)))
    tile_n = max(8, _round_up(int(tile_n), 8))
    n_pad = _round_up(N, tile_n)
    T = n_pad // tile_n
    if n_pad != N:
        x2d = jnp.pad(x2d, ((0, n_pad - N), (0, 0)))

    W1, W2, W3, gb, b3 = _prepare_params(params, out_dim, out_pad)
    A1 = jnp.asarray(_A1)
    A2 = jnp.asarray(_A2)
    cnt1 = float(N * NPOS1)   # BN1 reduction count: N * 4 * 4
    cnt2 = float(N * NPOS2)   # BN2 reduction count: N * 2 * 2

    # ------------------------------------------------------------------ #
    # Kernel A: whole-batch BN statistics -> folded per-lane scale/shift  #
    # ------------------------------------------------------------------ #
    def stats_kernel(x_ref, w1_ref, w2_ref, gb_ref, a1_ref, a2_ref,
                     bn_ref, sums1_ref, sums2_ref):
        p = pl.program_id(0)            # 0: conv1 stats, 1: BN1-apply + conv2 stats
        t = pl.program_id(1)            # tile over N
        last_t = pl.num_programs(1) - 1

        @pl.when((p == 0) & (t == 0))
        def _():
            sums1_ref[...] = jnp.zeros_like(sums1_ref)
            sums2_ref[...] = jnp.zeros_like(sums2_ref)

        # Hoisted BN1 finalize: once, not per tile.  Folded scale/shift land in
        # the resident output block and are reused by every p==1 tile.
        @pl.when((p == 1) & (t == 0))
        def _():
            mom1 = jnp.dot(sums1_ref[...], a1_ref[...],
                           preferred_element_type=jnp.float32) * (1.0 / cnt1)
            mean1 = mom1[0:1, :]
            inv1 = jax.lax.rsqrt(mom1[1:2, :] - mean1 * mean1 + EPS)
            scale1 = gb_ref[0:1, :] * inv1
            bn_ref[0:1, :] = scale1
            bn_ref[1:2, :] = gb_ref[1:2, :] - mean1 * scale1

        # Mask padded rows out of the statistics.
        rows = jax.lax.broadcasted_iota(jnp.int32, (tile_n, 1), 0) + t * tile_n
        valid = (rows < N).astype(jnp.float32)                       # (TN, 1)

        # Conv1 as a single im2col MXU matmul -> lane-dense (TN, 128) slab.
        c1 = jnp.dot(x_ref[...], w1_ref[...], preferred_element_type=jnp.float32)

        @pl.when(p == 0)
        def _():
            c1m = c1 * valid
            sums1_ref[0:1, :] += jnp.sum(c1m, axis=0, keepdims=True)
            sums1_ref[1:2, :] += jnp.sum(c1m * c1, axis=0, keepdims=True)

        @pl.when(p == 1)
        def _():
            h1 = jnp.maximum(c1 * bn_ref[0:1, :] + bn_ref[1:2, :], 0.0)
            # 2x2 max-pool via lane rotations: bring (h, w+1) then (h+1, w).
            m = jnp.maximum(h1, pltpu.roll(h1, 120, axis=1))   # shift -8 mod 128
            m = jnp.maximum(m, pltpu.roll(m, 96, axis=1))      # shift -32 mod 128
            # Conv2 as one im2col matmul (pooled lanes -> 64 real output cols).
            c2 = jnp.dot(m, w2_ref[...], preferred_element_type=jnp.float32)
            c2m = c2 * valid
            sums2_ref[0:1, :] += jnp.sum(c2m, axis=0, keepdims=True)
            sums2_ref[1:2, :] += jnp.sum(c2m * c2, axis=0, keepdims=True)

        # BN2 finalize once, after the last tile's contribution is in.
        @pl.when((p == 1) & (t == last_t))
        def _():
            mom2 = jnp.dot(sums2_ref[...], a2_ref[...],
                           preferred_element_type=jnp.float32) * (1.0 / cnt2)
            mean2 = mom2[0:1, :]
            inv2 = jax.lax.rsqrt(mom2[1:2, :] - mean2 * mean2 + EPS)
            scale2 = gb_ref[2:3, :] * inv2
            bn_ref[2:3, :] = scale2
            bn_ref[3:4, :] = gb_ref[3:4, :] - mean2 * scale2

    const2 = lambda p, t: (0, 0)
    bn = pl.pallas_call(
        stats_kernel,
        grid=(2, T),
        in_specs=[
            pl.BlockSpec((tile_n, H * W), lambda p, t: (t, 0)),
            pl.BlockSpec((H * W, S1), const2),
            pl.BlockSpec((S1, S2), const2),
            pl.BlockSpec((4, S1), const2),
            pl.BlockSpec((S1, S1), const2),
            pl.BlockSpec((S2, S2), const2),
        ],
        out_specs=pl.BlockSpec((4, S1), const2),
        out_shape=jax.ShapeDtypeStruct((4, S1), jnp.float32),
        scratch_shapes=[pltpu.VMEM((2, S1), jnp.float32),
                        pltpu.VMEM((2, S2), jnp.float32)],
        compiler_params=pltpu.CompilerParams(
            dimension_semantics=("arbitrary", "arbitrary"),
            vmem_limit_bytes=32 * 1024 * 1024),
    )(x2d, W1, W2, gb, A1, A2)

    # ------------------------------------------------------------------ #
    # Kernel B: apply (fully parallel over N tiles -> megacore friendly)  #
    # ------------------------------------------------------------------ #
    def apply_kernel(x_ref, w1_ref, w2_ref, w3_ref, bn_ref, b3_ref, o_ref):
        c1 = jnp.dot(x_ref[...], w1_ref[...], preferred_element_type=jnp.float32)
        h1 = jnp.maximum(c1 * bn_ref[0:1, :] + bn_ref[1:2, :], 0.0)
        m1 = jnp.maximum(h1, pltpu.roll(h1, 120, axis=1))
        m1 = jnp.maximum(m1, pltpu.roll(m1, 96, axis=1))
        c2 = jnp.dot(m1, w2_ref[...], preferred_element_type=jnp.float32)
        h2 = jnp.maximum(c2 * bn_ref[2:3, :] + bn_ref[3:4, :], 0.0)
        m2 = jnp.maximum(h2, pltpu.roll(h2, 112, axis=1))   # shift -16 mod 128
        m2 = jnp.maximum(m2, pltpu.roll(m2, 96, axis=1))    # shift -32 mod 128
        out = jnp.dot(m2, w3_ref[...],
                      preferred_element_type=jnp.float32) + b3_ref[...]
        o_ref[...] = out.astype(o_ref.dtype)

    const1 = lambda t: (0, 0)
    out = pl.pallas_call(
        apply_kernel,
        grid=(T,),
        in_specs=[
            pl.BlockSpec((tile_n, H * W), lambda t: (t, 0)),
            pl.BlockSpec((H * W, S1), const1),
            pl.BlockSpec((S1, S2), const1),
            pl.BlockSpec((S2, out_pad), const1),
            pl.BlockSpec((4, S1), const1),
            pl.BlockSpec((1, out_pad), const1),
        ],
        out_specs=pl.BlockSpec((tile_n, out_pad), lambda t: (t, 0)),
        out_shape=jax.ShapeDtypeStruct((n_pad, out_pad), jnp.float32),
        compiler_params=pltpu.CompilerParams(
            dimension_semantics=("parallel",),
            vmem_limit_bytes=32 * 1024 * 1024),
    )(x2d, W1, W2, W3, bn, b3)

    return out[:N, :out_dim]


def init_params(key, out_dim=16):
    # Deterministic synthetic parameters (torch-layout shapes), not a checkpoint.
    ks = jax.random.split(key, 10)
    p = {}
    p["w1"] = 0.3 * jax.random.normal(ks[0], (C1, 1, 3, 3), jnp.float32)
    p["b1"] = 0.1 * jax.random.normal(ks[1], (C1,), jnp.float32)
    p["g1"] = 1.0 + 0.1 * jax.random.normal(ks[2], (C1,), jnp.float32)
    p["be1"] = 0.1 * jax.random.normal(ks[3], (C1,), jnp.float32)
    p["w2"] = 0.2 * jax.random.normal(ks[4], (C2, C1, 3, 3), jnp.float32)
    p["b2"] = 0.1 * jax.random.normal(ks[5], (C2,), jnp.float32)
    p["g2"] = 1.0 + 0.1 * jax.random.normal(ks[6], (C2,), jnp.float32)
    p["be2"] = 0.1 * jax.random.normal(ks[7], (C2,), jnp.float32)
    p["w3"] = 0.2 * jax.random.normal(ks[8], (out_dim, C2), jnp.float32)
    p["b3"] = 0.1 * jax.random.normal(ks[9], (out_dim,), jnp.float32)
    return p


def ref_forward(x, p):
    # Pure-JAX reference mirroring the PyTorch module (training-mode BN).
    def conv(x, w, b):
        y = jax.lax.conv_general_dilated(x, w, (1, 1), ((1, 1), (1, 1)),
                                         dimension_numbers=("NCHW", "OIHW", "NCHW"))
        return y + b[None, :, None, None]

    def bn(x, g, be):
        m = jnp.mean(x, axis=(0, 2, 3), keepdims=True)
        v = jnp.var(x, axis=(0, 2, 3), keepdims=True)
        return (x - m) * jax.lax.rsqrt(v + EPS) * g[None, :, None, None] + be[None, :, None, None]

    def pool(x):
        return jax.lax.reduce_window(x, -jnp.inf, jax.lax.max,
                                     (1, 1, 2, 2), (1, 1, 2, 2), "VALID")

    h = pool(jax.nn.relu(bn(conv(x, p["w1"], p["b1"]), p["g1"], p["be1"])))
    h = pool(jax.nn.relu(bn(conv(h, p["w2"], p["b2"]), p["g2"], p["be2"])))
    h = h.reshape(h.shape[0], -1)
    return h @ p["w3"].T + p["b3"][None, :]


if __name__ == "__main__":
    key = jax.random.PRNGKey(0)
    k_x, k_x2, k_p = jax.random.split(key, 3)
    params = init_params(k_p, out_dim=16)

    # batch_size=2, sequence_length=4  ->  N = 8 block observations of (1, 4, 4)
    block = jax.random.normal(k_x, (8, 1, H, W), jnp.float32)
    out = jax.block_until_ready(block_encoder_forward(block, params))
    ref = ref_forward(block, params)
    np.testing.assert_allclose(np.asarray(out), np.asarray(ref), rtol=2e-4, atol=2e-4)

    # Larger case exercising the multi-tile grid and padded-row masking.
    block2 = jax.random.normal(k_x2, (50, 1, H, W), jnp.float32)
    out2 = jax.block_until_ready(block_encoder_forward(block2, params, tile_n=16))
    ref2 = ref_forward(block2, params)
    np.testing.assert_allclose(np.asarray(out2), np.asarray(ref2), rtol=2e-4, atol=2e-4)

    print("KERNEL_OK")
</pallas_src>

<mosaic_0001>
module attributes {stable_mosaic.version = 11 : i64} {
  func.func @stats_kernel(%arg0: i32, %arg1: i32, %arg2: memref<8x16xf32, #tpu.memory_space<vmem>>, %arg3: memref<16x128xf32, #tpu.memory_space<vmem>>, %arg4: memref<128x128xf32, #tpu.memory_space<vmem>>, %arg5: memref<4x128xf32, #tpu.memory_space<vmem>>, %arg6: memref<128x128xf32, #tpu.memory_space<vmem>>, %arg7: memref<128x128xf32, #tpu.memory_space<vmem>>, %arg8: memref<4x128xf32, #tpu.memory_space<vmem>>, %arg9: memref<2x128xf32, #tpu.memory_space<vmem>>, %arg10: memref<2x128xf32, #tpu.memory_space<vmem>>) attributes {dimension_semantics = [#tpu.dimension_semantics<arbitrary>, #tpu.dimension_semantics<arbitrary>], iteration_bounds = array<i64: 2, 1>, scalar_prefetch = 0 : i64, scratch_operands = 2 : i64, tpu.core_type = #tpu.core_type<tc>, window_params = [{transform_indices = @transform_0, window_bounds = array<i64: 8, 16>}, {pipeline_mode = #tpu.pipeline_mode<synchronous>, transform_indices = @transform_1, window_bounds = array<i64: 16, 128>}, {pipeline_mode = #tpu.pipeline_mode<synchronous>, transform_indices = @transform_2, window_bounds = array<i64: 128, 128>}, {pipeline_mode = #tpu.pipeline_mode<synchronous>, transform_indices = @transform_3, window_bounds = array<i64: 4, 128>}, {pipeline_mode = #tpu.pipeline_mode<synchronous>, transform_indices = @transform_4, window_bounds = array<i64: 128, 128>}, {pipeline_mode = #tpu.pipeline_mode<synchronous>, transform_indices = @transform_5, window_bounds = array<i64: 128, 128>}, {pipeline_mode = #tpu.pipeline_mode<synchronous>, transform_indices = @transform_6, window_bounds = array<i64: 4, 128>}]} {
    %c0_i32 = arith.constant 0 : i32
    %0 = arith.cmpi eq, %arg0, %c0_i32 : i32
    %c0_i32_0 = arith.constant 0 : i32
    %1 = arith.cmpi eq, %arg1, %c0_i32_0 : i32
    %2 = arith.andi %0, %1 : i1
    %3 = arith.extui %2 : i1 to i32
    %c0_i32_1 = arith.constant 0 : i32
    %4 = arith.cmpi ne, %3, %c0_i32_1 : i32
    scf.if %4 {
      %cst_15 = arith.constant 0.000000e+00 : f32
      %32 = vector.broadcast %cst_15 : f32 to vector<2x128xf32>
      %c0_16 = arith.constant 0 : index
      %c0_17 = arith.constant 0 : index
      %33 = vector.load %arg9[%c0_16, %c0_17] : memref<2x128xf32, #tpu.memory_space<vmem>>, vector<2x128xf32>
      tpu.vector_store %arg9[%c0_16, %c0_17], %32 {strides = array<i32>} : memref<2x128xf32, #tpu.memory_space<vmem>>, vector<2x128xf32>,
      %cst_18 = arith.constant 0.000000e+00 : f32
      %34 = vector.broadcast %cst_18 : f32 to vector<2x128xf32>
      %c0_19 = arith.constant 0 : index
      %c0_20 = arith.constant 0 : index
      %35 = vector.load %arg10[%c0_19, %c0_20] : memref<2x128xf32, #tpu.memory_space<vmem>>, vector<2x128xf32>
      tpu.vector_store %arg10[%c0_19, %c0_20], %34 {strides = array<i32>} : memref<2x128xf32, #tpu.memory_space<vmem>>, vector<2x128xf32>,
    } else {
    }
    %c1_i32 = arith.constant 1 : i32
    %5 = arith.cmpi eq, %arg0, %c1_i32 : i32
    %c0_i32_2 = arith.constant 0 : i32
    %6 = arith.cmpi eq, %arg1, %c0_i32_2 : i32
    %7 = arith.andi %5, %6 : i1
    %8 = arith.extui %7 : i1 to i32
    %c0_i32_3 = arith.constant 0 : i32
    %9 = arith.cmpi ne, %8, %c0_i32_3 : i32
    scf.if %9 {
      %c0_15 = arith.constant 0 : index
      %c0_16 = arith.constant 0 : index
      %32 = vector.load %arg9[%c0_15, %c0_16] : memref<2x128xf32, #tpu.memory_space<vmem>>, vector<2x128xf32>
      %c0_17 = arith.constant 0 : index
      %c0_18 = arith.constant 0 : index
      %33 = vector.load %arg6[%c0_17, %c0_18] : memref<128x128xf32, #tpu.memory_space<vmem>>, vector<128x128xf32>
      %cst_19 = arith.constant dense<0.000000e+00> : vector<2x128xf32>
      %34 = tpu.matmul %32, %33, %cst_19 {dimension_numbers = #tpu.dot_dimension_numbers<[1], [0], [0], [1], [0, 0, 1, 1], [], []>} : vector<2x128xf32>, vector<128x128xf32>, vector<2x128xf32> -> vector<2x128xf32>
      %cst_20 = arith.constant 7.812500e-03 : f32
      %35 = vector.broadcast %cst_20 : f32 to vector<2x128xf32>
      %36 = arith.mulf %34, %35 : vector<2x128xf32>
      %37 = vector.extract_strided_slice %36 {offsets = [0, 0], sizes = [1, 128], strides = [1, 1]} : vector<2x128xf32> to vector<1x128xf32>
      %38 = vector.extract_strided_slice %36 {offsets = [1, 0], sizes = [1, 128], strides = [1, 1]} : vector<2x128xf32> to vector<1x128xf32>
      %39 = arith.mulf %37, %37 : vector<1x128xf32>
      %40 = arith.subf %38, %39 : vector<1x128xf32>
      %cst_21 = arith.constant 9.99999974E-6 : f32
      %41 = vector.broadcast %cst_21 : f32 to vector<1x128xf32>
      %42 = arith.addf %40, %41 : vector<1x128xf32>
      %43 = math.rsqrt %42 : vector<1x128xf32>
      %c0_22 = arith.constant 0 : index
      %c0_23 = arith.constant 0 : index
      %44 = vector.load %arg5[%c0_22, %c0_23] : memref<4x128xf32, #tpu.memory_space<vmem>>, vector<1x128xf32>
      %45 = arith.mulf %44, %43 : vector<1x128xf32>
      %c0_24 = arith.constant 0 : index
      %c0_25 = arith.constant 0 : index
      %46 = vector.load %arg8[%c0_24, %c0_25] : memref<4x128xf32, #tpu.memory_space<vmem>>, vector<1x128xf32>
      tpu.vector_store %arg8[%c0_24, %c0_25], %45 {strides = array<i32>} : memref<4x128xf32, #tpu.memory_space<vmem>>, vector<1x128xf32>,
      %c1 = arith.constant 1 : index
      %c0_26 = arith.constant 0 : index
      %47 = vector.load %arg5[%c1, %c0_26] : memref<4x128xf32, #tpu.memory_space<vmem>>, vector<1x128xf32>
      %48 = arith.mulf %37, %45 : vector<1x128xf32>
      %49 = arith.subf %47, %48 : vector<1x128xf32>
      %c1_27 = arith.constant 1 : index
      %c0_28 = arith.constant 0 : index
      %50 = vector.load %arg8[%c1_27, %c0_28] : memref<4x128xf32, #tpu.memory_space<vmem>>, vector<1x128xf32>
      tpu.vector_store %arg8[%c1_27, %c0_28], %49 {strides = array<i32>} : memref<4x128xf32, #tpu.memory_space<vmem>>, vector<1x128xf32>,
    } else {
    }
    %10 = tpu.iota {dimensions = array<i32: 0>} : vector<8x1xi32>
    %c8_i32 = arith.constant 8 : i32
    %11 = arith.muli %arg1, %c8_i32 : i32
    %12 = vector.broadcast %11 : i32 to vector<8x1xi32>
    %13 = arith.addi %10, %12 : vector<8x1xi32>
    %c8_i32_4 = arith.constant 8 : i32
    %14 = vector.broadcast %c8_i32_4 : i32 to vector<8x1xi32>
    %15 = arith.cmpi slt, %13, %14 : vector<8x1xi32>
    %16 = arith.extui %15 : vector<8x1xi1> to vector<8x1xi32>
    %17 = arith.sitofp %16 : vector<8x1xi32> to vector<8x1xf32>
    %c0 = arith.constant 0 : index
    %c0_5 = arith.constant 0 : index
    %18 = vector.load %arg2[%c0, %c0_5] : memref<8x16xf32, #tpu.memory_space<vmem>>, vector<8x16xf32>
    %c0_6 = arith.constant 0 : index
    %c0_7 = arith.constant 0 : index
    %19 = vector.load %arg3[%c0_6, %c0_7] : memref<16x128xf32, #tpu.memory_space<vmem>>, vector<16x128xf32>
    %cst = arith.constant dense<0.000000e+00> : vector<8x128xf32>
    %20 = tpu.matmul %18, %19, %cst {dimension_numbers = #tpu.dot_dimension_numbers<[1], [0], [0], [1], [0, 0, 1, 1], [], []>} : vector<8x16xf32>, vector<16x128xf32>, vector<8x128xf32> -> vector<8x128xf32>
    %c0_i32_8 = arith.constant 0 : i32
    %21 = arith.cmpi eq, %arg0, %c0_i32_8 : i32
    %22 = arith.extui %21 : i1 to i32
    %c0_i32_9 = arith.constant 0 : i32
    %23 = arith.cmpi ne, %22, %c0_i32_9 : i32
    scf.if %23 {
      %32 = vector.broadcast %17 : vector<8x1xf32> to vector<8x128xf32>
      %33 = arith.mulf %20, %32 : vector<8x128xf32>
      %c0_15 = arith.constant 0 : index
      %c0_16 = arith.constant 0 : index
      %34 = vector.load %arg9[%c0_15, %c0_16] : memref<2x128xf32, #tpu.memory_space<vmem>>, vector<1x128xf32>
      %cst_17 = arith.constant dense<0.000000e+00> : vector<128xf32>
      %35 = vector.multi_reduction <add>, %33, %cst_17 [0] : vector<8x128xf32> to vector<128xf32>
      %36 = vector.shape_cast %35 : vector<128xf32> to vector<1x128xf32>
      %37 = arith.addf %34, %36 : vector<1x128xf32>
      %c0_18 = arith.constant 0 : index
      %c0_19 = arith.constant 0 : index
      %38 = vector.load %arg9[%c0_18, %c0_19] : memref<2x128xf32, #tpu.memory_space<vmem>>, vector<1x128xf32>
      tpu.vector_store %arg9[%c0_18, %c0_19], %37 {strides = array<i32>} : memref<2x128xf32, #tpu.memory_space<vmem>>, vector<1x128xf32>,
      %c1 = arith.constant 1 : index
      %c0_20 = arith.constant 0 : index
      %39 = vector.load %arg9[%c1, %c0_20] : memref<2x128xf32, #tpu.memory_space<vmem>>, vector<1x128xf32>
      %40 = arith.mulf %33, %20 : vector<8x128xf32>
      %cst_21 = arith.constant dense<0.000000e+00> : vector<128xf32>
      %41 = vector.multi_reduction <add>, %40, %cst_21 [0] : vector<8x128xf32> to vector<128xf32>
      %42 = vector.shape_cast %41 : vector<128xf32> to vector<1x128xf32>
      %43 = arith.addf %39, %42 : vector<1x128xf32>
      %c1_22 = arith.constant 1 : index
      %c0_23 = arith.constant 0 : index
      %44 = vector.load %arg9[%c1_22, %c0_23] : memref<2x128xf32, #tpu.memory_space<vmem>>, vector<1x128xf32>
      tpu.vector_store %arg9[%c1_22, %c0_23], %43 {strides = array<i32>} : memref<2x128xf32, #tpu.memory_space<vmem>>, vector<1x128xf32>,
    } else {
    }
    %c1_i32_10 = arith.constant 1 : i32
    %24 = arith.cmpi eq, %arg0, %c1_i32_10 : i32
    %25 = arith.extui %24 : i1 to i32
    %c0_i32_11 = arith.constant 0 : i32
    %26 = arith.cmpi ne, %25, %c0_i32_11 : i32
    scf.if %26 {
      %c0_15 = arith.constant 0 : index
      %c0_16 = arith.constant 0 : index
      %32 = vector.load %arg8[%c0_15, %c0_16] : memref<4x128xf32, #tpu.memory_space<vmem>>, vector<1x128xf32>
      %33 = vector.broadcast %32 : vector<1x128xf32> to vector<8x128xf32>
      %34 = arith.mulf %20, %33 : vector<8x128xf32>
      %c1 = arith.constant 1 : index
      %c0_17 = arith.constant 0 : index
      %35 = vector.load %arg8[%c1, %c0_17] : memref<4x128xf32, #tpu.memory_space<vmem>>, vector<1x128xf32>
      %36 = vector.broadcast %35 : vector<1x128xf32> to vector<8x128xf32>
      %37 = arith.addf %34, %36 : vector<8x128xf32>
      %cst_18 = arith.constant 0.000000e+00 : f32
      %38 = vector.broadcast %cst_18 : f32 to vector<8x128xf32>
      %39 = arith.maximumf %37, %38 : vector<8x128xf32>
      %c120_i32 = arith.constant 120 : i32
      %40 = tpu.dynamic_rotate %39 by %c120_i32 dim 1 : vector<8x128xf32>, i32 -> vector<8x128xf32>
      %41 = arith.maximumf %39, %40 : vector<8x128xf32>
      %c96_i32 = arith.constant 96 : i32
      %42 = tpu.dynamic_rotate %41 by %c96_i32 dim 1 : vector<8x128xf32>, i32 -> vector<8x128xf32>
      %43 = arith.maximumf %41, %42 : vector<8x128xf32>
      %c0_19 = arith.constant 0 : index
      %c0_20 = arith.constant 0 : index
      %44 = vector.load %arg4[%c0_19, %c0_20] : memref<128x128xf32, #tpu.memory_space<vmem>>, vector<128x128xf32>
      %cst_21 = arith.constant dense<0.000000e+00> : vector<8x128xf32>
      %45 = tpu.matmul %43, %44, %cst_21 {dimension_numbers = #tpu.dot_dimension_numbers<[1], [0], [0], [1], [0, 0, 1, 1], [], []>} : vector<8x128xf32>, vector<128x128xf32>, vector<8x128xf32> -> vector<8x128xf32>
      %46 = vector.broadcast %17 : vector<8x1xf32> to vector<8x128xf32>
      %47 = arith.mulf %45, %46 : vector<8x128xf32>
      %c0_22 = arith.constant 0 : index
      %c0_23 = arith.constant 0 : index
      %48 = vector.load %arg10[%c0_22, %c0_23] : memref<2x128xf32, #tpu.memory_space<vmem>>, vector<1x128xf32>
      %cst_24 = arith.constant dense<0.000000e+00> : vector<128xf32>
      %49 = vector.multi_reduction <add>, %47, %cst_24 [0] : vector<8x128xf32> to vector<128xf32>
      %50 = vector.shape_cast %49 : vector<128xf32> to vector<1x128xf32>
      %51 = arith.addf %48, %50 : vector<1x128xf32>
      %c0_25 = arith.constant 0 : index
      %c0_26 = arith.constant 0 : index
      %52 = vector.load %arg10[%c0_25, %c0_26] : memref<2x128xf32, #tpu.memory_space<vmem>>, vector<1x128xf32>
      tpu.vector_store %arg10[%c0_25, %c0_26], %51 {strides = array<i32>} : memref<2x128xf32, #tpu.memory_space<vmem>>, vector<1x128xf32>,
      %c1_27 = arith.constant 1 : index
      %c0_28 = arith.constant 0 : index
      %53 = vector.load %arg10[%c1_27, %c0_28] : memref<2x128xf32, #tpu.memory_space<vmem>>, vector<1x128xf32>
      %54 = arith.mulf %47, %45 : vector<8x128xf32>
      %cst_29 = arith.constant dense<0.000000e+00> : vector<128xf32>
      %55 = vector.multi_reduction <add>, %54, %cst_29 [0] : vector<8x128xf32> to vector<128xf32>
      %56 = vector.shape_cast %55 : vector<128xf32> to vector<1x128xf32>
      %57 = arith.addf %53, %56 : vector<1x128xf32>
      %c1_30 = arith.constant 1 : index
      %c0_31 = arith.constant 0 : index
      %58 = vector.load %arg10[%c1_30, %c0_31] : memref<2x128xf32, #tpu.memory_space<vmem>>, vector<1x128xf32>
      tpu.vector_store %arg10[%c1_30, %c0_31], %57 {strides = array<i32>} : memref<2x128xf32, #tpu.memory_space<vmem>>, vector<1x128xf32>,
    } else {
    }
    %c1_i32_12 = arith.constant 1 : i32
    %27 = arith.cmpi eq, %arg0, %c1_i32_12 : i32
    %c0_i32_13 = arith.constant 0 : i32
    %28 = arith.cmpi eq, %arg1, %c0_i32_13 : i32
    %29 = arith.andi %27, %28 : i1
    %30 = arith.extui %29 : i1 to i32
    %c0_i32_14 = arith.constant 0 : i32
    %31 = arith.cmpi ne, %30, %c0_i32_14 : i32
    scf.if %31 {
      %c0_15 = arith.constant 0 : index
      %c0_16 = arith.constant 0 : index
      %32 = vector.load %arg10[%c0_15, %c0_16] : memref<2x128xf32, #tpu.memory_space<vmem>>, vector<2x128xf32>
      %c0_17 = arith.constant 0 : index
      %c0_18 = arith.constant 0 : index
      %33 = vector.load %arg7[%c0_17, %c0_18] : memref<128x128xf32, #tpu.memory_space<vmem>>, vector<128x128xf32>
      %cst_19 = arith.constant dense<0.000000e+00> : vector<2x128xf32>
      %34 = tpu.matmul %32, %33, %cst_19 {dimension_numbers = #tpu.dot_dimension_numbers<[1], [0], [0], [1], [0, 0, 1, 1], [], []>} : vector<2x128xf32>, vector<128x128xf32>, vector<2x128xf32> -> vector<2x128xf32>
      %cst_20 = arith.constant 3.125000e-02 : f32
      %35 = vector.broadcast %cst_20 : f32 to vector<2x128xf32>
      %36 = arith.mulf %34, %35 : vector<2x128xf32>
      %37 = vector.extract_strided_slice %36 {offsets = [0, 0], sizes = [1, 128], strides = [1, 1]} : vector<2x128xf32> to vector<1x128xf32>
      %38 = vector.extract_strided_slice %36 {offsets = [1, 0], sizes = [1, 128], strides = [1, 1]} : vector<2x128xf32> to vector<1x128xf32>
      %39 = arith.mulf %37, %37 : vector<1x128xf32>
      %40 = arith.subf %38, %39 : vector<1x128xf32>
      %cst_21 = arith.constant 9.99999974E-6 : f32
      %41 = vector.broadcast %cst_21 : f32 to vector<1x128xf32>
      %42 = arith.addf %40, %41 : vector<1x128xf32>
      %43 = math.rsqrt %42 : vector<1x128xf32>
      %c2 = arith.constant 2 : index
      %c0_22 = arith.constant 0 : index
      %44 = vector.load %arg5[%c2, %c0_22] : memref<4x128xf32, #tpu.memory_space<vmem>>, vector<1x128xf32>
      %45 = arith.mulf %44, %43 : vector<1x128xf32>
      %c2_23 = arith.constant 2 : index
      %c0_24 = arith.constant 0 : index
      %46 = vector.load %arg8[%c2_23, %c0_24] : memref<4x128xf32, #tpu.memory_space<vmem>>, vector<1x128xf32>
      tpu.vector_store %arg8[%c2_23, %c0_24], %45 {strides = array<i32>} : memref<4x128xf32, #tpu.memory_space<vmem>>, vector<1x128xf32>,
      %c3 = arith.constant 3 : index
      %c0_25 = arith.constant 0 : index
      %47 = vector.load %arg5[%c3, %c0_25] : memref<4x128xf32, #tpu.memory_space<vmem>>, vector<1x128xf32>
      %48 = arith.mulf %37, %45 : vector<1x128xf32>
      %49 = arith.subf %47, %48 : vector<1x128xf32>
      %c3_26 = arith.constant 3 : index
      %c0_27 = arith.constant 0 : index
      %50 = vector.load %arg8[%c3_26, %c0_27] : memref<4x128xf32, #tpu.memory_space<vmem>>, vector<1x128xf32>
      tpu.vector_store %arg8[%c3_26, %c0_27], %49 {strides = array<i32>} : memref<4x128xf32, #tpu.memory_space<vmem>>, vector<1x128xf32>,
    } else {
    }
    return
  }
  func.func @transform_0(%arg0: i32, %arg1: i32) -> (i32, i32) {
    %c0_i32 = arith.constant 0 : i32
    %c0_i32_0 = arith.constant 0 : i32
    return %arg1, %c0_i32 : i32, i32
  }
  func.func @transform_1(%arg0: i32, %arg1: i32) -> (i32, i32) {
    %c0_i32 = arith.constant 0 : i32
    %c0_i32_0 = arith.constant 0 : i32
    %c0_i32_1 = arith.constant 0 : i32
    return %c0_i32, %c0_i32_0 : i32, i32
  }
  func.func @transform_2(%arg0: i32, %arg1: i32) -> (i32, i32) {
    %c0_i32 = arith.constant 0 : i32
    %c0_i32_0 = arith.constant 0 : i32
    %c0_i32_1 = arith.constant 0 : i32
    return %c0_i32, %c0_i32_0 : i32, i32
  }
  func.func @transform_3(%arg0: i32, %arg1: i32) -> (i32, i32) {
    %c0_i32 = arith.constant 0 : i32
    %c0_i32_0 = arith.constant 0 : i32
    %c0_i32_1 = arith.constant 0 : i32
    return %c0_i32, %c0_i32_0 : i32, i32
  }
  func.func @transform_4(%arg0: i32, %arg1: i32) -> (i32, i32) {
    %c0_i32 = arith.constant 0 : i32
    %c0_i32_0 = arith.constant 0 : i32
    %c0_i32_1 = arith.constant 0 : i32
    return %c0_i32, %c0_i32_0 : i32, i32
  }
  func.func @transform_5(%arg0: i32, %arg1: i32) -> (i32, i32) {
    %c0_i32 = arith.constant 0 : i32
    %c0_i32_0 = arith.constant 0 : i32
    %c0_i32_1 = arith.constant 0 : i32
    return %c0_i32, %c0_i32_0 : i32, i32
  }
  func.func @transform_6(%arg0: i32, %arg1: i32) -> (i32, i32) {
    %c0_i32 = arith.constant 0 : i32
    %c0_i32_0 = arith.constant 0 : i32
    %c0_i32_1 = arith.constant 0 : i32
    return %c0_i32, %c0_i32_0 : i32, i32
  }
}

</mosaic_0001>

<llo_original>
// kernel: tpu_custom_call.1
$region0: #{tpu_custom_call.1}
  #allocation0 [shape = 'u32[]', space=smem, size = 0x4, offset = 0x4, fixed_abs, tag = 'smem constant byte address 0x4 - core index']
  #allocation1 [shape = 'u32[72,128]{1,0:T(1,128)}', space=vmem, size = 0x9000, scoped, tag = 'internal scratch']
  #allocation2 [shape = 'f32[2,128]{1,0:T(2,128)}', space=vmem, size = 0x400, scoped, tag = 'scratch operand']
  #allocation3 [shape = 'f32[2,128]{1,0:T(2,128)}', space=vmem, size = 0x400, scoped, tag = 'scratch operand']
  %s0 = inlined_call_operand.hbm [shape: f32[8,16], index: 0, kind: input, shape index: {}]
  %s1 = inlined_call_operand.hbm [shape: f32[16,128], index: 1, kind: input, shape index: {}]
  %s2 = inlined_call_operand.hbm [shape: f32[128,128], index: 2, kind: input, shape index: {}]
  %s3 = inlined_call_operand.hbm [shape: f32[4,128], index: 3, kind: input, shape index: {}]
  %s4 = inlined_call_operand.hbm [shape: f32[128,128], index: 4, kind: input, shape index: {}]
  %s5 = inlined_call_operand.hbm [shape: f32[128,128], index: 5, kind: input, shape index: {}]
  %s6 = inlined_call_operand.hbm [shape: f32[4,128], index: 6, kind: output, shape index: {}]
  %s7 = sld [smem:[#allocation0]]
  $region101: #{tpu_custom_call.1} parent=0
    _
  %s9 = ssub.s32 1, %s7
  %s10 = scalar_select 0, %s9, %s7
  $region1: #{tpu_custom_call.1} parent=0
    #allocation4 [shape = 'u8[4096]{0}', space=vmem, size = 0x1000, scoped, tag = 'input window, operand 0, single buffered']
    #allocation5 [shape = 's32[2]{0}', space=sflag, size = 0x8, scoped, tag = 'scoped memory for tpu_custom_call.1']
    #allocation6 [shape = 's32[2]{0}', space=sflag, size = 0x8, scoped, tag = 'scoped memory for tpu_custom_call.1']
    #allocation7 [shape = 'u8[8192]{0}', space=vmem, size = 0x2000, scoped, tag = 'input window, operand 1, single buffered']
    #allocation8 [shape = 's32[1]{0}', space=sflag, size = 0x4, scoped, tag = 'scoped memory for tpu_custom_call.1']
    #allocation9 [shape = 'u8[65536]{0}', space=vmem, size = 0x10000, scoped, tag = 'input window, operand 2, single buffered']
    #allocation10 [shape = 'u8[2048]{0}', space=vmem, size = 0x800, scoped, tag = 'input window, operand 3, single buffered']
    #allocation11 [shape = 's32[1]{0}', space=sflag, size = 0x4, scoped, tag = 'scoped memory for tpu_custom_call.1']
    #allocation12 [shape = 'u8[65536]{0}', space=vmem, size = 0x10000, scoped, tag = 'input window, operand 4, single buffered']
    #allocation13 [shape = 'u8[65536]{0}', space=vmem, size = 0x10000, scoped, tag = 'input window, operand 5, single buffered']
    #allocation14 [shape = 's32[1]{0}', space=sflag, size = 0x4, scoped, tag = 'scoped memory for tpu_custom_call.1']
    #allocation15 [shape = 'u8[2048]{0}', space=vmem, size = 0x800, scoped, tag = 'output window, operand 0, single buffered']
    %11 = vsyncpa [#allocation5], 0
    %12 = vsyncpa [#allocation8], 0
    %13 = vsyncpa [#allocation11], 0
    %14 = vsyncpa [#allocation14], 0
    %15 = vsyncpa [#allocation6], 0
    loop: start=0, step=1, limit=4
    $region2: #{tpu_custom_call.1} parent=1 // loop_pre_header
      _
    $region3: #{tpu_custom_call.1} parent=1 // loop_header
      %s17 = sphi 0, %s21
      %p18 = scmp.ge.s32.totalorder %s17, 4
      %s24 = sphi 0, %s36
      %s25 = sphi 0, %s32
      %s26 = sphi 0, %s24
      %s27 = sphi 0, %s25
      %s28 = sphi 0, %s26
      %s29 = sphi 0, %s27
      %s39 = sphi 0, %s41
      %s42 = sphi 0, %s39
      %s43 = sphi 0, %s42
      %s59 = sphi 0, %s43
      %s63 = sphi 0, %s63
      %s65 = sphi 0, %s63
      %s66 = sphi 0, %s65
      %s80 = sphi 0, %s66
      %s84 = sphi 0, %s84
      %s86 = sphi 0, %s84
      %s87 = sphi 0, %s86
      %s101 = sphi 0, %s87
      %s105 = sphi 0, %s105
      %s107 = sphi 0, %s105
      %s108 = sphi 0, %s107
      %s122 = sphi 0, %s108
      %s126 = sphi 0, %s126
      %s128 = sphi 0, %s126
      %s129 = sphi 0, %s128
      %s143 = sphi 0, %s129
      %s147 = sphi 0, %s147
      %s149 = sphi 0, %s147
      %s150 = sphi 0, %s149
      %s164 = sphi 0, %s150
      %s168 = sphi 0, %s168
      %s170 = sphi 0, %s168
      %s171 = sphi 0, %s170
      %s185 = sphi 0, %s171
    $region4: #{tpu_custom_call.1} parent=1 // loop_header_branch
      %20 = sbr.rel (%p18) target = $region8
    $region5: #{tpu_custom_call.1} parent=1 // loop_body
      %s22 = ssub.s32 %s17, 1
      %s23 = ssub.s32 %s17, 2
      %s30 = sadd.s32 1, %s25
      %p31 = scmp.ge.s32.totalorder %s30, 1
      %s32 = scalar_select %p31, 0, %s30
      %s33 = sadd.s32 1, %s24
      %s34 = scalar_select %p31, %s33, %s24
      %p35 = scmp.ge.s32.totalorder %s34, 2
      %s36 = scalar_select %p35, 0, %s34
      %s37 = ssub.s32 %s25, %s32
      %p38 = scmp.eq.s32.totalorder %s37, 0
      %s40 = sadd.s32 %s39, 1
      %s41 = scalar_select %p38, %s39, %s40
      %p44 = pneg %p38
      %p45 = scmp.eq.s32.totalorder %s17, 1
      %p46 = por %p44, %p45
      %p47 = scmp.ne.s32.totalorder %s39, %s42
      %p48 = scmp.eq.s32.totalorder %s17, 0
      %p49 = por %p47, %p48
      %p50 = scmp.ne.s32.totalorder %s39, %s42
      %p51 = scmp.eq.s32.totalorder %s22, 1
      %p52 = por %p50, %p51
      %p53 = scmp.ne.s32.totalorder %s42, %s43
      %p54 = scmp.eq.s32.totalorder %s22, 0
      %p55 = por %p53, %p54
      %p56 = scmp.ne.s32.totalorder %s42, %s43
      %p57 = scmp.eq.s32.totalorder %s23, 1
      %p58 = por %p56, %p57
      %p60 = scmp.ne.s32.totalorder %s43, %s59
      %p61 = scmp.eq.s32.totalorder %s23, 0
      %p62 = por %p60, %p61
      %s64 = sadd.s32 %s63, 1
      %p67 = scmp.eq.s32.totalorder %s17, 1
      %p68 = scmp.ne.s32.totalorder %s63, %s65
      %p69 = scmp.eq.s32.totalorder %s17, 0
      %p70 = por %p68, %p69
      %p71 = scmp.ne.s32.totalorder %s63, %s65
      %p72 = scmp.eq.s32.totalorder %s22, 1
      %p73 = por %p71, %p72
      %p74 = scmp.ne.s32.totalorder %s65, %s66
      %p75 = scmp.eq.s32.totalorder %s22, 0
      %p76 = por %p74, %p75
      %p77 = scmp.ne.s32.totalorder %s65, %s66
      %p78 = scmp.eq.s32.totalorder %s23, 1
      %p79 = por %p77, %p78
      %p81 = scmp.ne.s32.totalorder %s66, %s80
      %p82 = scmp.eq.s32.totalorder %s23, 0
      %p83 = por %p81, %p82
      %s85 = sadd.s32 %s84, 1
      %p88 = scmp.eq.s32.totalorder %s17, 1
      %p89 = scmp.ne.s32.totalorder %s84, %s86
      %p90 = scmp.eq.s32.totalorder %s17, 0
      %p91 = por %p89, %p90
      %p92 = scmp.ne.s32.totalorder %s84, %s86
      %p93 = scmp.eq.s32.totalorder %s22, 1
      %p94 = por %p92, %p93
      %p95 = scmp.ne.s32.totalorder %s86, %s87
      %p96 = scmp.eq.s32.totalorder %s22, 0
      %p97 = por %p95, %p96
      %p98 = scmp.ne.s32.totalorder %s86, %s87
      %p99 = scmp.eq.s32.totalorder %s23, 1
      %p100 = por %p98, %p99
      %p102 = scmp.ne.s32.totalorder %s87, %s101
      %p103 = scmp.eq.s32.totalorder %s23, 0
      %p104 = por %p102, %p103
      %s106 = sadd.s32 %s105, 1
      %p109 = scmp.eq.s32.totalorder %s17, 1
      %p110 = scmp.ne.s32.totalorder %s105, %s107
      %p111 = scmp.eq.s32.totalorder %s17, 0
      %p112 = por %p110, %p111
      %p113 = scmp.ne.s32.totalorder %s105, %s107
      %p114 = scmp.eq.s32.totalorder %s22, 1
      %p115 = por %p113, %p114
      %p116 = scmp.ne.s32.totalorder %s107, %s108
      %p117 = scmp.eq.s32.totalorder %s22, 0
      %p118 = por %p116, %p117
      %p119 = scmp.ne.s32.totalorder %s107, %s108
      %p120 = scmp.eq.s32.totalorder %s23, 1
      %p121 = por %p119, %p120
      %p123 = scmp.ne.s32.totalorder %s108, %s122
      %p124 = scmp.eq.s32.totalorder %s23, 0
      %p125 = por %p123, %p124
      %s127 = sadd.s32 %s126, 1
      %p130 = scmp.eq.s32.totalorder %s17, 1
      %p131 = scmp.ne.s32.totalorder %s126, %s128
      %p132 = scmp.eq.s32.totalorder %s17, 0
      %p133 = por %p131, %p132
      %p134 = scmp.ne.s32.totalorder %s126, %s128
      %p135 = scmp.eq.s32.totalorder %s22, 1
      %p136 = por %p134, %p135
      %p137 = scmp.ne.s32.totalorder %s128, %s129
      %p138 = scmp.eq.s32.totalorder %s22, 0
      %p139 = por %p137, %p138
      %p140 = scmp.ne.s32.totalorder %s128, %s129
      %p141 = scmp.eq.s32.totalorder %s23, 1
      %p142 = por %p140, %p141
      %p144 = scmp.ne.s32.totalorder %s129, %s143
      %p145 = scmp.eq.s32.totalorder %s23, 0
      %p146 = por %p144, %p145
      %s148 = sadd.s32 %s147, 1
      %p151 = scmp.eq.s32.totalorder %s17, 1
      %p152 = scmp.ne.s32.totalorder %s147, %s149
      %p153 = scmp.eq.s32.totalorder %s17, 0
      %p154 = por %p152, %p153
      %p155 = scmp.ne.s32.totalorder %s147, %s149
      %p156 = scmp.eq.s32.totalorder %s22, 1
      %p157 = por %p155, %p156
      %p158 = scmp.ne.s32.totalorder %s149, %s150
      %p159 = scmp.eq.s32.totalorder %s22, 0
      %p160 = por %p158, %p159
      %p161 = scmp.ne.s32.totalorder %s149, %s150
      %p162 = scmp.eq.s32.totalorder %s23, 1
      %p163 = por %p161, %p162
      %p165 = scmp.ne.s32.totalorder %s150, %s164
      %p166 = scmp.eq.s32.totalorder %s23, 0
      %p167 = por %p165, %p166
      %s169 = sadd.s32 %s168, 1
      %p172 = scmp.eq.s32.totalorder %s17, 1
      %p173 = scmp.ne.s32.totalorder %s168, %s170
      %p174 = scmp.eq.s32.totalorder %s17, 0
      %p175 = por %p173, %p174
      %p176 = scmp.ne.s32.totalorder %s168, %s170
      %p177 = scmp.eq.s32.totalorder %s22, 1
      %p178 = por %p176, %p177
      %p179 = scmp.ne.s32.totalorder %s170, %s171
      %p180 = scmp.eq.s32.totalorder %s22, 0
      %p181 = por %p179, %p180
      %p182 = scmp.ne.s32.totalorder %s170, %s171
      %p183 = scmp.eq.s32.totalorder %s23, 1
      %p184 = por %p182, %p183
      %p186 = scmp.ne.s32.totalorder %s171, %s185
      %p187 = scmp.eq.s32.totalorder %s23, 0
      %p188 = por %p186, %p187
      %p189 = scmp.le.s32.totalorder 1, %s17
      %p190 = scmp.lt.s32.totalorder %s17, 3
      %p191 = pnand %p189, %p190
      %p192 = pneg %p191
      // Predicated region
      $region9: #{tpu_custom_call.1} parent=5 // pred_check
        _
      $region10: #{tpu_custom_call.1} parent=5 // pred_check_branch
        %194 = sbr.rel (%p191) target = $region12
      $region11: #{tpu_custom_call.1} parent=5 // pred_region
        %s195 = ssub.s32 %s17, 1
        // Predicated region
        $region13: #{tpu_custom_call.1} parent=11 // pred_check
          %p196 = pneg %p55
        $region14: #{tpu_custom_call.1} parent=11 // pred_check_branch
          %198 = sbr.rel (%p196) target = $region16
        $region15: #{tpu_custom_call.1} parent=11 // pred_region
          %200 = vsyncadd [#allocation5], 0
          %s201 = smul.addr %s27, 8
          %s202 = scalar_lea.hbm %s0, %s201
          %s204 = sshll.u32 %s202, 4
          %s205 = int_to_ptr.hbm [resolvable:$true] %s204
          %s206 = sshll.u32 [#allocation4], 4
          %s207 = int_to_ptr.vmem [resolvable:$true] %s206
          %209 = dma.hbm_to_vmem [thread:$0]  %s205, 128, %s207, [#allocation5]
        $region16: #{tpu_custom_call.1} parent=11 // pred_fallthru
          _
        // Predicated region
        $region17: #{tpu_custom_call.1} parent=11 // pred_check
          %p210 = pneg %p76
        $region18: #{tpu_custom_call.1} parent=11 // pred_check_branch
          %212 = sbr.rel (%p210) target = $region20
        $region19: #{tpu_custom_call.1} parent=11 // pred_region
          %214 = vsyncadd [#allocation8], 0
          %s215 = sshll.u32 %s1, 4
          %s216 = int_to_ptr.hbm [resolvable:$true] %s215
          %s217 = sshll.u32 [#allocation7], 4
          %s218 = int_to_ptr.vmem [resolvable:$true] %s217
          %223 = dma.hbm_to_vmem [thread:$0]  %s216, 256, %s218, [#allocation8], 128, 128, 8
        $region20: #{tpu_custom_call.1} parent=11 // pred_fallthru
          _
        // Predicated region
        $region21: #{tpu_custom_call.1} parent=11 // pred_check
          %p224 = pneg %p97
        $region22: #{tpu_custom_call.1} parent=11 // pred_check_branch
          %226 = sbr.rel (%p224) target = $region24
        $region23: #{tpu_custom_call.1} parent=11 // pred_region
          %228 = vsyncadd [#allocation8], 0
          %s229 = sshll.u32 %s2, 4
          %s230 = int_to_ptr.hbm [resolvable:$true] %s229
          %s231 = sshll.u32 [#allocation9], 4
          %s232 = int_to_ptr.vmem [resolvable:$true] %s231
          %237 = dma.hbm_to_vmem [thread:$0]  %s230, 2048, %s232, [#allocation8], 128, 128, 8
        $region24: #{tpu_custom_call.1} parent=11 // pred_fallthru
          _
        // Predicated region
        $region25: #{tpu_custom_call.1} parent=11 // pred_check
          %p238 = pneg %p118
        $region26: #{tpu_custom_call.1} parent=11 // pred_check_branch
          %240 = sbr.rel (%p238) target = $region28
        $region27: #{tpu_custom_call.1} parent=11 // pred_region
          %242 = vsyncadd [#allocation11], 0
          %s244 = sshll.u32 %s3, 4
          %s245 = int_to_ptr.hbm [resolvable:$true] %s244
          %s246 = sshll.u32 [#allocation10], 4
          %s247 = int_to_ptr.vmem [resolvable:$true] %s246
          %249 = dma.hbm_to_vmem [thread:$0]  %s245, 64, %s247, [#allocation11]
        $region28: #{tpu_custom_call.1} parent=11 // pred_fallthru
          _
        // Predicated region
        $region29: #{tpu_custom_call.1} parent=11 // pred_check
          %p250 = pneg %p139
        $region30: #{tpu_custom_call.1} parent=11 // pred_check_branch
          %252 = sbr.rel (%p250) target = $region32
        $region31: #{tpu_custom_call.1} parent=11 // pred_region
          %254 = vsyncadd [#allocation11], 0
          %s255 = sshll.u32 %s4, 4
          %s256 = int_to_ptr.hbm [resolvable:$true] %s255
          %s257 = sshll.u32 [#allocation12], 4
          %s258 = int_to_ptr.vmem [resolvable:$true] %s257
          %263 = dma.hbm_to_vmem [thread:$0]  %s256, 2048, %s258, [#allocation11], 128, 128, 8
        $region32: #{tpu_custom_call.1} parent=11 // pred_fallthru
          _
        // Predicated region
        $region33: #{tpu_custom_call.1} parent=11 // pred_check
          %p264 = pneg %p160
        $region34: #{tpu_custom_call.1} parent=11 // pred_check_branch
          %266 = sbr.rel (%p264) target = $region36
        $region35: #{tpu_custom_call.1} parent=11 // pred_region
          %268 = vsyncadd [#allocation14], 0
          %s269 = sshll.u32 %s5, 4
          %s270 = int_to_ptr.hbm [resolvable:$true] %s269
          %s271 = sshll.u32 [#allocation13], 4
          %s272 = int_to_ptr.vmem [resolvable:$true] %s271
          %277 = dma.hbm_to_vmem [thread:$0]  %s270, 2048, %s272, [#allocation14], 128, 128, 8
        $region36: #{tpu_custom_call.1} parent=11 // pred_fallthru
          _
      $region12: #{tpu_custom_call.1} parent=5 // pred_fallthru
        _
      %p278 = scmp.lt.s32.totalorder %s17, 2
      // Predicated region
      $region37: #{tpu_custom_call.1} parent=5 // pred_check
        %p279 = pneg %p278
      $region38: #{tpu_custom_call.1} parent=5 // pred_check_branch
        %281 = sbr.rel (%p279) target = $region40
      $region39: #{tpu_custom_call.1} parent=5 // pred_region
        _
      $region40: #{tpu_custom_call.1} parent=5 // pred_fallthru
        _
      %p282 = scmp.le.s32.totalorder 1, %s17
      %p283 = scmp.lt.s32.totalorder %s17, 3
      %p284 = pnand %p282, %p283
      %p285 = pneg %p284
      // Predicated region
      $region41: #{tpu_custom_call.1} parent=5 // pred_check
        _
      $region42: #{tpu_custom_call.1} parent=5 // pred_check_branch
        %287 = sbr.rel (%p284) target = $region44
      $region43: #{tpu_custom_call.1} parent=5 // pred_region
        %s288 = ssub.s32 %s17, 1
        // Predicated region
        $region45: #{tpu_custom_call.1} parent=43 // pred_check
          %p289 = pneg %p55
        $region46: #{tpu_custom_call.1} parent=43 // pred_check_branch
          %291 = sbr.rel (%p289) target = $region48
        $region47: #{tpu_custom_call.1} parent=43 // pred_region
          %293 = dma.done [#allocation5], 128
        $region48: #{tpu_custom_call.1} parent=43 // pred_fallthru
          _
        // Predicated region
        $region49: #{tpu_custom_call.1} parent=43 // pred_check
          %p294 = pneg %p76
        $region50: #{tpu_custom_call.1} parent=43 // pred_check_branch
          %296 = sbr.rel (%p294) target = $region52
        $region51: #{tpu_custom_call.1} parent=43 // pred_region
          %298 = dma.done [#allocation8], 256
        $region52: #{tpu_custom_call.1} parent=43 // pred_fallthru
          _
        // Predicated region
        $region53: #{tpu_custom_call.1} parent=43 // pred_check
          %p299 = pneg %p97
        $region54: #{tpu_custom_call.1} parent=43 // pred_check_branch
          %301 = sbr.rel (%p299) target = $region56
        $region55: #{tpu_custom_call.1} parent=43 // pred_region
          %303 = dma.done [#allocation8], 2048
        $region56: #{tpu_custom_call.1} parent=43 // pred_fallthru
          _
        // Predicated region
        $region57: #{tpu_custom_call.1} parent=43 // pred_check
          %p304 = pneg %p118
        $region58: #{tpu_custom_call.1} parent=43 // pred_check_branch
          %306 = sbr.rel (%p304) target = $region60
        $region59: #{tpu_custom_call.1} parent=43 // pred_region
          %308 = dma.done [#allocation11], 64
        $region60: #{tpu_custom_call.1} parent=43 // pred_fallthru
          _
        // Predicated region
        $region61: #{tpu_custom_call.1} parent=43 // pred_check
          %p309 = pneg %p139
        $region62: #{tpu_custom_call.1} parent=43 // pred_check_branch
          %311 = sbr.rel (%p309) target = $region64
        $region63: #{tpu_custom_call.1} parent=43 // pred_region
          %313 = dma.done [#allocation11], 2048
        $region64: #{tpu_custom_call.1} parent=43 // pred_fallthru
          _
        // Predicated region
        $region65: #{tpu_custom_call.1} parent=43 // pred_check
          %p314 = pneg %p160
        $region66: #{tpu_custom_call.1} parent=43 // pred_check_branch
          %316 = sbr.rel (%p314) target = $region68
        $region67: #{tpu_custom_call.1} parent=43 // pred_region
          %318 = dma.done [#allocation14], 2048
        $region68: #{tpu_custom_call.1} parent=43 // pred_fallthru
          _
        %p319 = pneg %p55
        %p320 = pneg %p52
        %p321 = pneg %p76
        %p322 = pneg %p73
        %p323 = pneg %p97
        %p324 = pneg %p94
        %p325 = pneg %p118
        %p326 = pneg %p115
        %p327 = pneg %p139
        %p328 = pneg %p136
        %p329 = pneg %p160
        %p330 = pneg %p157
        %p331 = pneg %p181
        %p332 = pneg %p178
        %p333 = scmp.eq.s32.totalorder %s26, 0
        %p334 = scmp.eq.s32.totalorder %s27, 0
        %p335 = pnand %p333, %p334
        %p336 = pneg %p335
        // Predicated region
        $region69: #{tpu_custom_call.1} parent=43 // pred_check
          _
        $region70: #{tpu_custom_call.1} parent=43 // pred_check_branch
          %338 = sbr.rel (%p335) target = $region72
        $region71: #{tpu_custom_call.1} parent=43 // pred_region
          %339 = vst [vmem:[#allocation2] sm:$0x3] 0.0
          %340 = vst [vmem:[#allocation3] sm:$0x3] 0.0
        $region72: #{tpu_custom_call.1} parent=43 // pred_fallthru
          _
        %p341 = scmp.eq.s32.totalorder %s26, 1
        %p342 = pnand %p341, %p334
        %p343 = pneg %p342
        // Predicated region
        $region73: #{tpu_custom_call.1} parent=43 // pred_check
          _
        $region74: #{tpu_custom_call.1} parent=43 // pred_check_branch
          %345 = sbr.rel (%p342) target = $region76
        $region75: #{tpu_custom_call.1} parent=43 // pred_region
          %v346 = vld [vmem:[#allocation2] sm:$0x3]
          %v347 = vld [vmem:[#allocation12] sm:$0xff]
          %v348 = vld [vmem:[#allocation12 + $0x8] sm:$0xff]
          %v349 = vld [vmem:[#allocation12 + $0x10] sm:$0xff]
          %v350 = vld [vmem:[#allocation12 + $0x18] sm:$0xff]
          %v351 = vld [vmem:[#allocation12 + $0x20] sm:$0xff]
          %v352 = vld [vmem:[#allocation12 + $0x28] sm:$0xff]
          %v353 = vld [vmem:[#allocation12 + $0x30] sm:$0xff]
          %v354 = vld [vmem:[#allocation12 + $0x38] sm:$0xff]
          %v355 = vld [vmem:[#allocation12 + $0x40] sm:$0xff]
          %v356 = vld [vmem:[#allocation12 + $0x48] sm:$0xff]
          %v357 = vld [vmem:[#allocation12 + $0x50] sm:$0xff]
          %v358 = vld [vmem:[#allocation12 + $0x58] sm:$0xff]
          %v359 = vld [vmem:[#allocation12 + $0x60] sm:$0xff]
          %v360 = vld [vmem:[#allocation12 + $0x68] sm:$0xff]
          %v361 = vld [vmem:[#allocation12 + $0x70] sm:$0xff]
          %v362 = vld [vmem:[#allocation12 + $0x78] sm:$0xff]
          %363 = vmatpush.msra.mxu0 %v362
          %364 = vmatpush.msra.mxu0 %v361
          %365 = vmatpush.msra.mxu0 %v360
          %366 = vmatpush.msra.mxu0 %v359
          %367 = vmatpush.msra.mxu0 %v358
          %368 = vmatpush.msra.mxu0 %v357
          %369 = vmatpush.msra.mxu0 %v356
          %370 = vmatpush.msra.mxu0 %v355
          %371 = vmatpush.msra.mxu0 %v354
          %372 = vmatpush.msra.mxu0 %v353
          %373 = vmatpush.msra.mxu0 %v352
          %374 = vmatpush.msra.mxu0 %v351
          %375 = vmatpush.msra.mxu0 %v350
          %376 = vmatpush.msra.mxu0 %v349
          %377 = vmatpush.msra.mxu0 %v348
          %378 = vmatpush.msra.mxu0 %v347
          %379 = vmatmul.f32.gmra.mxu0 %v346
          %v380 = vpop.f32.mrf.mxu0
          %v381 = vadd.f32 0.0, %v380
          %382 = vdwg.mxu0
          %v383 = vmul.f32 %v381, 0.0078125
          %v384 = vmul.f32 %v383, %v383
          %v386 = vrot.slane %v384, 7
          %v388 = vsub.f32 %v383, %v386
          %v389 = vadd.f32 %v388, 1e-05
          %v390 = vrsqrt.pop %v389
          %v391 = vmul.f32 %v390, %v389
          %v392 = vmul.f32 %v391, %v390
          %v393 = vmul.f32 0.5, %v392
          %v394 = vsub.f32 1.5, %v393
          %v395 = vmul.f32 %v390, %v394
          %vm396 = vweird.f32 %v389
          %vm397 = vweird.f32 %v390
          %vm398 = vmor %vm396, %vm397
          %v399 = vsel %vm398, %v390, %v395
          %v400 = vld [vmem:[#allocation10] sm:$0x1]
          %v402 = vrot.slane %v399, 1
          %v404 = vmul.f32 %v400, %v402
          %405 = vst [vmem:[#allocation15] sm:$0x1] %v404
          %v406 = vld [vmem:[#allocation10 + $0x1] sm:$0x1]
          %v407 = vmul.f32 %v383, %v404
          %v408 = vsub.f32 %v406, %v407
          %409 = vst [vmem:[#allocation15 + $0x1] sm:$0x1] %v408
        $region76: #{tpu_custom_call.1} parent=43 // pred_fallthru
          _
        %v410 = vlaneseq
        %v411 = vshrl.u32 %v410, 7
        %s412 = smul.u32 %s27, 8
        %v413 = vstv %s412
        %v414 = vadd.s32 %v411, %v413
        %vm415 = vcmp.lt.s32.totalorder %v414, 8
        %v416 = vsel %vm415, 1, 0
        %v417 = vcvt.s32.f32 %v416
        %v418 = vld [vmem:[#allocation4] sm:$0xff]
        %v419 = vld [vmem:[#allocation7] sm:$0xff]
        %v420 = vld [vmem:[#allocation7 + $0x8] sm:$0xff]
        %vm421 = vcmask 130048
        %v423 = vsel %vm421, %v418, 0
        %425 = vmatpush.msra.mxu0 0.0
        %426 = vmatpush.msra.mxu0 0.0
        %427 = vmatpush.msra.mxu0 0.0
        %428 = vmatpush.msra.mxu0 0.0
        %429 = vmatpush.msra.mxu0 0.0
        %430 = vmatpush.msra.mxu0 0.0
        %431 = vmatpush.msra.mxu0 0.0
        %432 = vmatpush.msra.mxu0 0.0
        %433 = vmatpush.msra.mxu0 0.0
        %434 = vmatpush.msra.mxu0 0.0
        %435 = vmatpush.msra.mxu0 0.0
        %436 = vmatpush.msra.mxu0 0.0
        %437 = vmatpush.msra.mxu0 0.0
        %438 = vmatpush.msra.mxu0 0.0
        %439 = vmatpush.msra.mxu0 %v420
        %440 = vmatpush.msra.mxu0 %v419
        %441 = vmatmul.f32.gmra.mxu0 %v423
        %v442 = vpop.f32.mrf.mxu0
        %v443 = vadd.f32 0.0, %v442
        %444 = vdwg.mxu0
        // Predicated region
        $region77: #{tpu_custom_call.1} parent=43 // pred_check
          %p445 = pneg %p333
        $region78: #{tpu_custom_call.1} parent=43 // pred_check_branch
          %447 = sbr.rel (%p445) target = $region80
        $region79: #{tpu_custom_call.1} parent=43 // pred_region
          %v448 = vmul.f32 %v443, %v417
          %v449 = vld [vmem:[#allocation2] sm:$0x1]
          %v450 = vrot.slane %v448, 4
          %v451 = vadd.f32 %v448, %v450
          %v452 = vrot.slane %v451, 2
          %v453 = vadd.f32 %v451, %v452
          %v454 = vrot.slane %v453, 1
          %v455 = vadd.f32 %v453, %v454
          %v456 = vadd.f32 %v449, %v455
          %457 = vst [vmem:[#allocation2] sm:$0x1] %v456
          %v458 = vld [vmem:[#allocation2 + $0x1] sm:$0x1]
          %v459 = vmul.f32 %v448, %v443
          %v460 = vrot.slane %v459, 4
          %v461 = vadd.f32 %v459, %v460
          %v462 = vrot.slane %v461, 2
          %v463 = vadd.f32 %v461, %v462
          %v464 = vrot.slane %v463, 1
          %v465 = vadd.f32 %v463, %v464
          %v466 = vadd.f32 %v458, %v465
          %467 = vst [vmem:[#allocation2 + $0x1] sm:$0x1] %v466
        $region80: #{tpu_custom_call.1} parent=43 // pred_fallthru
          _
        // Predicated region
        $region81: #{tpu_custom_call.1} parent=43 // pred_check
          %p468 = pneg %p341
        $region82: #{tpu_custom_call.1} parent=43 // pred_check_branch
          %470 = sbr.rel (%p468) target = $region84
        $region83: #{tpu_custom_call.1} parent=43 // pred_region
          %v471 = vld [vmem:[#allocation15] sm:$0x1]
          %v472 = vperm.slane %v471, 0
          %v473 = vmul.f32 %v443, %v472
          %v474 = vld [vmem:[#allocation15 + $0x1] sm:$0x1]
          %v475 = vperm.slane %v474, 0
          %v476 = vadd.f32 %v473, %v475
          %v477 = vmax.f32 %v476, 0.0
          %478 = vrot.lane.b32.xlu0 %v477, 120
          %v479 = vpop.permute.xlu0 %478
          %v480 = vmax.f32 %v477, %v479
          %481 = vrot.lane.b32.xlu0 %v480, 96
          %v482 = vpop.permute.xlu0 %481
          %v483 = vmax.f32 %v480, %v482
          %v484 = vld [vmem:[#allocation9] sm:$0xff]
          %v485 = vld [vmem:[#allocation9 + $0x8] sm:$0xff]
          %v486 = vld [vmem:[#allocation9 + $0x10] sm:$0xff]
          %v487 = vld [vmem:[#allocation9 + $0x18] sm:$0xff]
          %v488 = vld [vmem:[#allocation9 + $0x20] sm:$0xff]
          %v489 = vld [vmem:[#allocation9 + $0x28] sm:$0xff]
          %v490 = vld [vmem:[#allocation9 + $0x30] sm:$0xff]
          %v491 = vld [vmem:[#allocation9 + $0x38] sm:$0xff]
          %v492 = vld [vmem:[#allocation9 + $0x40] sm:$0xff]
          %v493 = vld [vmem:[#allocation9 + $0x48] sm:$0xff]
          %v494 = vld [vmem:[#allocation9 + $0x50] sm:$0xff]
          %v495 = vld [vmem:[#allocation9 + $0x58] sm:$0xff]
          %v496 = vld [vmem:[#allocation9 + $0x60] sm:$0xff]
          %v497 = vld [vmem:[#allocation9 + $0x68] sm:$0xff]
          %v498 = vld [vmem:[#allocation9 + $0x70] sm:$0xff]
          %v499 = vld [vmem:[#allocation9 + $0x78] sm:$0xff]
          %500 = vmatpush.msra.mxu0 %v499
          %501 = vmatpush.msra.mxu0 %v498
          %502 = vmatpush.msra.mxu0 %v497
          %503 = vmatpush.msra.mxu0 %v496
          %504 = vmatpush.msra.mxu0 %v495
          %505 = vmatpush.msra.mxu0 %v494
          %506 = vmatpush.msra.mxu0 %v493
          %507 = vmatpush.msra.mxu0 %v492
          %508 = vmatpush.msra.mxu0 %v491
          %509 = vmatpush.msra.mxu0 %v490
          %510 = vmatpush.msra.mxu0 %v489
          %511 = vmatpush.msra.mxu0 %v488
          %512 = vmatpush.msra.mxu0 %v487
          %513 = vmatpush.msra.mxu0 %v486
          %514 = vmatpush.msra.mxu0 %v485
          %515 = vmatpush.msra.mxu0 %v484
          %516 = vmatmul.f32.gmra.mxu0 %v483
          %v517 = vpop.f32.mrf.mxu0
          %v518 = vadd.f32 0.0, %v517
          %519 = vdwg.mxu0
          %v520 = vmul.f32 %v518, %v417
          %v521 = vld [vmem:[#allocation3] sm:$0x1]
          %v522 = vrot.slane %v520, 4
          %v523 = vadd.f32 %v520, %v522
          %v524 = vrot.slane %v523, 2
          %v525 = vadd.f32 %v523, %v524
          %v526 = vrot.slane %v525, 1
          %v527 = vadd.f32 %v525, %v526
          %v528 = vadd.f32 %v521, %v527
          %529 = vst [vmem:[#allocation3] sm:$0x1] %v528
          %v530 = vld [vmem:[#allocation3 + $0x1] sm:$0x1]
          %v531 = vmul.f32 %v520, %v518
          %v532 = vrot.slane %v531, 4
          %v533 = vadd.f32 %v531, %v532
          %v534 = vrot.slane %v533, 2
          %v535 = vadd.f32 %v533, %v534
          %v536 = vrot.slane %v535, 1
          %v537 = vadd.f32 %v535, %v536
          %v538 = vadd.f32 %v530, %v537
          %539 = vst [vmem:[#allocation3 + $0x1] sm:$0x1] %v538
        $region84: #{tpu_custom_call.1} parent=43 // pred_fallthru
          _
        // Predicated region
        $region85: #{tpu_custom_call.1} parent=43 // pred_check
          _
        $region86: #{tpu_custom_call.1} parent=43 // pred_check_branch
          %541 = sbr.rel (%p342) target = $region88
        $region87: #{tpu_custom_call.1} parent=43 // pred_region
          %v542 = vld [vmem:[#allocation3] sm:$0x3]
          %v543 = vld [vmem:[#allocation13] sm:$0xff]
          %v544 = vld [vmem:[#allocation13 + $0x8] sm:$0xff]
          %v545 = vld [vmem:[#allocation13 + $0x10] sm:$0xff]
          %v546 = vld [vmem:[#allocation13 + $0x18] sm:$0xff]
          %v547 = vld [vmem:[#allocation13 + $0x20] sm:$0xff]
          %v548 = vld [vmem:[#allocation13 + $0x28] sm:$0xff]
          %v549 = vld [vmem:[#allocation13 + $0x30] sm:$0xff]
          %v550 = vld [vmem:[#allocation13 + $0x38] sm:$0xff]
          %v551 = vld [vmem:[#allocation13 + $0x40] sm:$0xff]
          %v552 = vld [vmem:[#allocation13 + $0x48] sm:$0xff]
          %v553 = vld [vmem:[#allocation13 + $0x50] sm:$0xff]
          %v554 = vld [vmem:[#allocation13 + $0x58] sm:$0xff]
          %v555 = vld [vmem:[#allocation13 + $0x60] sm:$0xff]
          %v556 = vld [vmem:[#allocation13 + $0x68] sm:$0xff]
          %v557 = vld [vmem:[#allocation13 + $0x70] sm:$0xff]
          %v558 = vld [vmem:[#allocation13 + $0x78] sm:$0xff]
          %559 = vmatpush.msra.mxu0 %v558
          %560 = vmatpush.msra.mxu0 %v557
          %561 = vmatpush.msra.mxu0 %v556
          %562 = vmatpush.msra.mxu0 %v555
          %563 = vmatpush.msra.mxu0 %v554
          %564 = vmatpush.msra.mxu0 %v553
          %565 = vmatpush.msra.mxu0 %v552
          %566 = vmatpush.msra.mxu0 %v551
          %567 = vmatpush.msra.mxu0 %v550
          %568 = vmatpush.msra.mxu0 %v549
          %569 = vmatpush.msra.mxu0 %v548
          %570 = vmatpush.msra.mxu0 %v547
          %571 = vmatpush.msra.mxu0 %v546
          %572 = vmatpush.msra.mxu0 %v545
          %573 = vmatpush.msra.mxu0 %v544
          %574 = vmatpush.msra.mxu0 %v543
          %575 = vmatmul.f32.gmra.mxu0 %v542
          %v576 = vpop.f32.mrf.mxu0
          %v577 = vadd.f32 0.0, %v576
          %578 = vdwg.mxu0
          %v579 = vmul.f32 %v577, 0.03125
          %v580 = vmul.f32 %v579, %v579
          %v582 = vrot.slane %v580, 7
          %v584 = vsub.f32 %v579, %v582
          %v585 = vadd.f32 %v584, 1e-05
          %v586 = vrsqrt.pop %v585
          %v587 = vmul.f32 %v586, %v585
          %v588 = vmul.f32 %v587, %v586
          %v589 = vmul.f32 0.5, %v588
          %v590 = vsub.f32 1.5, %v589
          %v591 = vmul.f32 %v586, %v590
          %vm592 = vweird.f32 %v585
          %vm593 = vweird.f32 %v586
          %vm594 = vmor %vm592, %vm593
          %v595 = vsel %vm594, %v586, %v591
          %v596 = vld [vmem:[#allocation10 + $0x2] sm:$0x1]
          %v598 = vrot.slane %v595, 1
          %v600 = vmul.f32 %v596, %v598
          %601 = vst [vmem:[#allocation15 + $0x2] sm:$0x1] %v600
          %v602 = vld [vmem:[#allocation10 + $0x3] sm:$0x1]
          %v603 = vmul.f32 %v579, %v600
          %v604 = vsub.f32 %v602, %v603
          %605 = vst [vmem:[#allocation15 + $0x3] sm:$0x1] %v604
        $region88: #{tpu_custom_call.1} parent=43 // pred_fallthru
          _
        // Predicated region
        $region89: #{tpu_custom_call.1} parent=43 // pred_check
          %p606 = pneg %p178
        $region90: #{tpu_custom_call.1} parent=43 // pred_check_branch
          %608 = sbr.rel (%p606) target = $region92
        $region91: #{tpu_custom_call.1} parent=43 // pred_region
          %610 = vsyncadd [#allocation6], 0
          %s612 = sshll.u32 [#allocation15], 4
          %s613 = int_to_ptr.vmem [resolvable:$true] %s612
          %s614 = sshll.u32 %s6, 4
          %s615 = int_to_ptr.hbm [resolvable:$true] %s614
          %617 = dma.vmem_to_hbm [thread:$0]  %s613, 64, %s615, [#allocation6]
        $region92: #{tpu_custom_call.1} parent=43 // pred_fallthru
          _
        // Predicated region
        $region93: #{tpu_custom_call.1} parent=43 // pred_check
          %p618 = pneg %p178
        $region94: #{tpu_custom_call.1} parent=43 // pred_check_branch
          %620 = sbr.rel (%p618) target = $region96
        $region95: #{tpu_custom_call.1} parent=43 // pred_region
          %622 = dma.done [#allocation6], 64
        $region96: #{tpu_custom_call.1} parent=43 // pred_fallthru
          _
      $region44: #{tpu_custom_call.1} parent=5 // pred_fallthru
        _
      %p623 = scmp.le.s32.totalorder 2, %s17
      // Predicated region
      $region97: #{tpu_custom_call.1} parent=5 // pred_check
        %p624 = pneg %p623
      $region98: #{tpu_custom_call.1} parent=5 // pred_check_branch
        %626 = sbr.rel (%p624) target = $region100
      $region99: #{tpu_custom_call.1} parent=5 // pred_region
        %s627 = ssub.s32 %s17, 2
      $region100: #{tpu_custom_call.1} parent=5 // pred_fallthru
        _
    $region6: #{tpu_custom_call.1} parent=1 // loop_footer
      %s21 = sadd.s32 1, %s17
    $region7: #{tpu_custom_call.1} parent=1 // loop_footer_branch
      %16 = sbr.rel target = $region3
    $region8: #{tpu_custom_call.1} parent=1 // loop_exit
      _
    %628 = vsyncpa [#allocation5], 1
    %s629 = scalar_lea.sflag [#allocation5], 1
    %630 = vsyncpa %s629, 1
    %631 = vsyncpa [#allocation8], 1
    %632 = vsyncpa [#allocation11], 1
    %633 = vsyncpa [#allocation14], 1
    %634 = vsyncpa [#allocation6], 1
    %s635 = scalar_lea.sflag [#allocation6], 1
    %636 = vsyncpa %s635, 1

</llo_original>
